<compile_context>
chip_gen: v6e
topology: v6e:2x2x1
jax: 0.10.0
libtpu: 0.0.40
codegen_flags: <defaults>
</compile_context>

<pallas_src>
import jax
import jax.numpy as jnp
from jax.experimental import pallas as pl
from jax.experimental.pallas import tpu as pltpu


def _mlp_kernel(x_ref,
                w1_ref, b1_ref,
                w2_ref, b2_ref,
                w3_ref, b3_ref,
                w4_ref, b4_ref,
                w5_ref, b5_ref,
                o_ref):
    # Feature-major: h is (features, TB); batch lives on the lane axis.
    h = x_ref[...]                                    # (33, TB) f32

    def dense(w_ref, b_ref, h):
        # (out, in) @ (in, TB) -> (out, TB), f32 accumulation on the MXU.
        return jnp.dot(w_ref[...], h,
                       preferred_element_type=jnp.float32) + b_ref[...]

    h = jnp.maximum(dense(w1_ref, b1_ref, h), 0.0)    # 33 -> 50, ReLU
    h = jnp.maximum(dense(w2_ref, b2_ref, h), 0.0)    # 50 -> 80, ReLU
    h = jnp.maximum(dense(w3_ref, b3_ref, h), 0.0)    # 80 -> 100, ReLU
    h = jnp.maximum(dense(w4_ref, b4_ref, h), 0.0)    # 100 -> 50, ReLU
    z = dense(w5_ref, b5_ref, h)                      # 50 -> 1

    # sigmoid(z) = 1 / (1 + exp(-z)); exp -> EUP, reciprocal exact (1e-5 tol).
    o_ref[...] = pl.reciprocal(1.0 + jnp.exp(-z)).astype(o_ref.dtype)


def _round_up(n, m):
    return ((n + m - 1) // m) * m


def bin_cla_model(x, params, block_b=1024):
    """x: (B, 33) float32; params: list of (W (out, in), b (out, 1)) pairs.

    Returns (B, 1) float32 sigmoid probabilities.
    """
    B, F = x.shape
    assert F == 33, "BinClaModel expects 33 input features"

    # Batch tile: multiple of 128 (lane width), capped at block_b.
    TB = min(_round_up(block_b, 128), _round_up(B, 128))
    B_pad = _round_up(B, TB)
    grid = (B_pad // TB,)

    # Feature-major input: (33, B_pad), batch on lanes. Zero-pad the tail tile.
    xt = jnp.zeros((F, B_pad), jnp.float32).at[:, :B].set(x.T)

    flat_args = [xt]
    in_specs = [pl.BlockSpec((F, TB), lambda i: (0, i))]
    for w, b in params:
        flat_args.extend([w, b])
        # Weights/biases: full-array VMEM blocks, constant block index
        # -> pinned in VMEM for the whole grid, no per-step re-DMA.
        in_specs.append(pl.BlockSpec(w.shape, lambda i: (0, 0)))
        in_specs.append(pl.BlockSpec(b.shape, lambda i: (0, 0)))

    out = pl.pallas_call(
        _mlp_kernel,
        out_shape=jax.ShapeDtypeStruct((1, B_pad), jnp.float32),
        grid=grid,
        in_specs=in_specs,
        out_specs=pl.BlockSpec((1, TB), lambda i: (0, i)),
        compiler_params=pltpu.CompilerParams(
            dimension_semantics=("parallel",)),
    )(*flat_args)

    # Back to batch-major (B, 1), dropping the padded columns.
    return out[:, :B].T


def init_params(key):
    """Deterministic init matching nn.Linear default: U(-1/sqrt(in), 1/sqrt(in)).

    Weights are stored PyTorch-style as (out, in); biases as (out, 1) so they
    broadcast along the lane (batch) axis inside the kernel.
    """
    dims = [(33, 50), (50, 80), (80, 100), (100, 50), (50, 1)]
    params = []
    for (fan_in, fan_out) in dims:
        key, kw, kb = jax.random.split(key, 3)
        bound = 1.0 / (fan_in ** 0.5)
        w = jax.random.uniform(kw, (fan_out, fan_in), jnp.float32, -bound, bound)
        b = jax.random.uniform(kb, (fan_out, 1), jnp.float32, -bound, bound)
        params.append((w, b))
    return params


def reference(x, params):
    y = x
    for i, (w, b) in enumerate(params):
        y = y @ w.T + b.T
        if i < len(params) - 1:
            y = jnp.maximum(y, 0.0)
    return jax.nn.sigmoid(y)


if __name__ == "__main__":
    key = jax.random.PRNGKey(0)
    kp, kx = jax.random.split(key)
    params = init_params(kp)

    B = 8
    x = jax.random.normal(kx, (B, 33), jnp.float32)

    out = bin_cla_model(x, params)
    out = jax.block_until_ready(out)

    ref = reference(x, params)
    assert out.shape == (B, 1)
    assert jnp.allclose(out, ref, atol=1e-5, rtol=1e-5), "mismatch vs reference"

    # Also exercise a multi-tile, non-multiple batch to cover the grid path.
    B2 = 2500
    x2 = jax.random.normal(jax.random.PRNGKey(1), (B2, 33), jnp.float32)
    out2 = jax.block_until_ready(bin_cla_model(x2, params, block_b=1024))
    ref2 = reference(x2, params)
    assert out2.shape == (B2, 1)
    assert jnp.allclose(out2, ref2, atol=1e-5, rtol=1e-5), "mismatch vs reference (large B)"

    print("KERNEL_OK")
</pallas_src>

<mosaic_0001>
module attributes {stable_mosaic.version = 11 : i64} {
  func.func @_mlp_kernel(%arg0: i32, %arg1: memref<33x128xf32, #tpu.memory_space<vmem>>, %arg2: memref<50x33xf32, #tpu.memory_space<vmem>>, %arg3: memref<50x1xf32, #tpu.memory_space<vmem>>, %arg4: memref<80x50xf32, #tpu.memory_space<vmem>>, %arg5: memref<80x1xf32, #tpu.memory_space<vmem>>, %arg6: memref<100x80xf32, #tpu.memory_space<vmem>>, %arg7: memref<100x1xf32, #tpu.memory_space<vmem>>, %arg8: memref<50x100xf32, #tpu.memory_space<vmem>>, %arg9: memref<50x1xf32, #tpu.memory_space<vmem>>, %arg10: memref<1x50xf32, #tpu.memory_space<vmem>>, %arg11: memref<1x1xf32, #tpu.memory_space<vmem>>, %arg12: memref<1x128xf32, #tpu.memory_space<vmem>>) attributes {dimension_semantics = [#tpu.dimension_semantics<parallel>], iteration_bounds = array<i64: 1>, scalar_prefetch = 0 : i64, scratch_operands = 0 : i64, tpu.core_type = #tpu.core_type<tc>, window_params = [{transform_indices = @transform_0, window_bounds = array<i64: 33, 128>}, {pipeline_mode = #tpu.pipeline_mode<synchronous>, transform_indices = @transform_1, window_bounds = array<i64: 50, 33>}, {pipeline_mode = #tpu.pipeline_mode<synchronous>, transform_indices = @transform_2, window_bounds = array<i64: 50, 1>}, {pipeline_mode = #tpu.pipeline_mode<synchronous>, transform_indices = @transform_3, window_bounds = array<i64: 80, 50>}, {pipeline_mode = #tpu.pipeline_mode<synchronous>, transform_indices = @transform_4, window_bounds = array<i64: 80, 1>}, {pipeline_mode = #tpu.pipeline_mode<synchronous>, transform_indices = @transform_5, window_bounds = array<i64: 100, 80>}, {pipeline_mode = #tpu.pipeline_mode<synchronous>, transform_indices = @transform_6, window_bounds = array<i64: 100, 1>}, {pipeline_mode = #tpu.pipeline_mode<synchronous>, transform_indices = @transform_7, window_bounds = array<i64: 50, 100>}, {pipeline_mode = #tpu.pipeline_mode<synchronous>, transform_indices = @transform_8, window_bounds = array<i64: 50, 1>}, {pipeline_mode = #tpu.pipeline_mode<synchronous>, transform_indices = @transform_9, window_bounds = array<i64: 1, 50>}, {pipeline_mode = #tpu.pipeline_mode<synchronous>, transform_indices = @transform_10, window_bounds = array<i64: 1, 1>}, {transform_indices = @transform_11, window_bounds = array<i64: 1, 128>}]} {
    %c0 = arith.constant 0 : index
    %c0_0 = arith.constant 0 : index
    %0 = vector.load %arg1[%c0, %c0_0] : memref<33x128xf32, #tpu.memory_space<vmem>>, vector<33x128xf32>
    %c0_1 = arith.constant 0 : index
    %c0_2 = arith.constant 0 : index
    %1 = vector.load %arg2[%c0_1, %c0_2] : memref<50x33xf32, #tpu.memory_space<vmem>>, vector<50x33xf32>
    %cst = arith.constant dense<0.000000e+00> : vector<50x128xf32>
    %2 = tpu.matmul %1, %0, %cst {dimension_numbers = #tpu.dot_dimension_numbers<[1], [0], [0], [1], [0, 0, 1, 1], [], []>} : vector<50x33xf32>, vector<33x128xf32>, vector<50x128xf32> -> vector<50x128xf32>
    %c0_3 = arith.constant 0 : index
    %c0_4 = arith.constant 0 : index
    %3 = vector.load %arg3[%c0_3, %c0_4] : memref<50x1xf32, #tpu.memory_space<vmem>>, vector<50x1xf32>
    %4 = vector.broadcast %3 : vector<50x1xf32> to vector<50x128xf32>
    %5 = arith.addf %2, %4 : vector<50x128xf32>
    %cst_5 = arith.constant 0.000000e+00 : f32
    %6 = vector.broadcast %cst_5 : f32 to vector<50x128xf32>
    %7 = arith.maximumf %5, %6 : vector<50x128xf32>
    %c0_6 = arith.constant 0 : index
    %c0_7 = arith.constant 0 : index
    %8 = vector.load %arg4[%c0_6, %c0_7] : memref<80x50xf32, #tpu.memory_space<vmem>>, vector<80x50xf32>
    %cst_8 = arith.constant dense<0.000000e+00> : vector<80x128xf32>
    %9 = tpu.matmul %8, %7, %cst_8 {dimension_numbers = #tpu.dot_dimension_numbers<[1], [0], [0], [1], [0, 0, 1, 1], [], []>} : vector<80x50xf32>, vector<50x128xf32>, vector<80x128xf32> -> vector<80x128xf32>
    %c0_9 = arith.constant 0 : index
    %c0_10 = arith.constant 0 : index
    %10 = vector.load %arg5[%c0_9, %c0_10] : memref<80x1xf32, #tpu.memory_space<vmem>>, vector<80x1xf32>
    %11 = vector.broadcast %10 : vector<80x1xf32> to vector<80x128xf32>
    %12 = arith.addf %9, %11 : vector<80x128xf32>
    %cst_11 = arith.constant 0.000000e+00 : f32
    %13 = vector.broadcast %cst_11 : f32 to vector<80x128xf32>
    %14 = arith.maximumf %12, %13 : vector<80x128xf32>
    %c0_12 = arith.constant 0 : index
    %c0_13 = arith.constant 0 : index
    %15 = vector.load %arg6[%c0_12, %c0_13] : memref<100x80xf32, #tpu.memory_space<vmem>>, vector<100x80xf32>
    %cst_14 = arith.constant dense<0.000000e+00> : vector<100x128xf32>
    %16 = tpu.matmul %15, %14, %cst_14 {dimension_numbers = #tpu.dot_dimension_numbers<[1], [0], [0], [1], [0, 0, 1, 1], [], []>} : vector<100x80xf32>, vector<80x128xf32>, vector<100x128xf32> -> vector<100x128xf32>
    %c0_15 = arith.constant 0 : index
    %c0_16 = arith.constant 0 : index
    %17 = vector.load %arg7[%c0_15, %c0_16] : memref<100x1xf32, #tpu.memory_space<vmem>>, vector<100x1xf32>
    %18 = vector.broadcast %17 : vector<100x1xf32> to vector<100x128xf32>
    %19 = arith.addf %16, %18 : vector<100x128xf32>
    %cst_17 = arith.constant 0.000000e+00 : f32
    %20 = vector.broadcast %cst_17 : f32 to vector<100x128xf32>
    %21 = arith.maximumf %19, %20 : vector<100x128xf32>
    %c0_18 = arith.constant 0 : index
    %c0_19 = arith.constant 0 : index
    %22 = vector.load %arg8[%c0_18, %c0_19] : memref<50x100xf32, #tpu.memory_space<vmem>>, vector<50x100xf32>
    %cst_20 = arith.constant dense<0.000000e+00> : vector<50x128xf32>
    %23 = tpu.matmul %22, %21, %cst_20 {dimension_numbers = #tpu.dot_dimension_numbers<[1], [0], [0], [1], [0, 0, 1, 1], [], []>} : vector<50x100xf32>, vector<100x128xf32>, vector<50x128xf32> -> vector<50x128xf32>
    %c0_21 = arith.constant 0 : index
    %c0_22 = arith.constant 0 : index
    %24 = vector.load %arg9[%c0_21, %c0_22] : memref<50x1xf32, #tpu.memory_space<vmem>>, vector<50x1xf32>
    %25 = vector.broadcast %24 : vector<50x1xf32> to vector<50x128xf32>
    %26 = arith.addf %23, %25 : vector<50x128xf32>
    %cst_23 = arith.constant 0.000000e+00 : f32
    %27 = vector.broadcast %cst_23 : f32 to vector<50x128xf32>
    %28 = arith.maximumf %26, %27 : vector<50x128xf32>
    %c0_24 = arith.constant 0 : index
    %c0_25 = arith.constant 0 : index
    %29 = vector.load %arg10[%c0_24, %c0_25] : memref<1x50xf32, #tpu.memory_space<vmem>>, vector<1x50xf32>
    %cst_26 = arith.constant dense<0.000000e+00> : vector<1x128xf32>
    %30 = tpu.matmul %29, %28, %cst_26 {dimension_numbers = #tpu.dot_dimension_numbers<[1], [0], [0], [1], [0, 0, 1, 1], [], []>} : vector<1x50xf32>, vector<50x128xf32>, vector<1x128xf32> -> vector<1x128xf32>
    %c0_27 = arith.constant 0 : index
    %c0_28 = arith.constant 0 : index
    %31 = vector.load %arg11[%c0_27, %c0_28] : memref<1x1xf32, #tpu.memory_space<vmem>>, vector<1x1xf32>
    %32 = vector.broadcast %31 : vector<1x1xf32> to vector<1x128xf32>
    %33 = arith.addf %30, %32 : vector<1x128xf32>
    %cst_29 = arith.constant 0.000000e+00 : f32
    %34 = vector.broadcast %cst_29 : f32 to vector<1x128xf32>
    %35 = arith.subf %34, %33 : vector<1x128xf32>
    %36 = math.exp %35 : vector<1x128xf32>
    %cst_30 = arith.constant 1.000000e+00 : f32
    %37 = vector.broadcast %cst_30 : f32 to vector<1x128xf32>
    %38 = arith.addf %37, %36 : vector<1x128xf32>
    %39 = tpu.reciprocal %38 : vector<1x128xf32> -> vector<1x128xf32>
    %c0_31 = arith.constant 0 : index
    %c0_32 = arith.constant 0 : index
    %40 = vector.load %arg12[%c0_31, %c0_32] : memref<1x128xf32, #tpu.memory_space<vmem>>, vector<1x128xf32>
    tpu.vector_store %arg12[%c0_31, %c0_32], %39 {strides = array<i32>} : memref<1x128xf32, #tpu.memory_space<vmem>>, vector<1x128xf32>,
    return
  }
  func.func @transform_0(%arg0: i32) -> (i32, i32) {
    %c0_i32 = arith.constant 0 : i32
    %c0_i32_0 = arith.constant 0 : i32
    return %c0_i32, %arg0 : i32, i32
  }
  func.func @transform_1(%arg0: i32) -> (i32, i32) {
    %c0_i32 = arith.constant 0 : i32
    %c0_i32_0 = arith.constant 0 : i32
    %c0_i32_1 = arith.constant 0 : i32
    return %c0_i32, %c0_i32_0 : i32, i32
  }
  func.func @transform_2(%arg0: i32) -> (i32, i32) {
    %c0_i32 = arith.constant 0 : i32
    %c0_i32_0 = arith.constant 0 : i32
    %c0_i32_1 = arith.constant 0 : i32
    return %c0_i32, %c0_i32_0 : i32, i32
  }
  func.func @transform_3(%arg0: i32) -> (i32, i32) {
    %c0_i32 = arith.constant 0 : i32
    %c0_i32_0 = arith.constant 0 : i32
    %c0_i32_1 = arith.constant 0 : i32
    return %c0_i32, %c0_i32_0 : i32, i32
  }
  func.func @transform_4(%arg0: i32) -> (i32, i32) {
    %c0_i32 = arith.constant 0 : i32
    %c0_i32_0 = arith.constant 0 : i32
    %c0_i32_1 = arith.constant 0 : i32
    return %c0_i32, %c0_i32_0 : i32, i32
  }
  func.func @transform_5(%arg0: i32) -> (i32, i32) {
    %c0_i32 = arith.constant 0 : i32
    %c0_i32_0 = arith.constant 0 : i32
    %c0_i32_1 = arith.constant 0 : i32
    return %c0_i32, %c0_i32_0 : i32, i32
  }
  func.func @transform_6(%arg0: i32) -> (i32, i32) {
    %c0_i32 = arith.constant 0 : i32
    %c0_i32_0 = arith.constant 0 : i32
    %c0_i32_1 = arith.constant 0 : i32
    return %c0_i32, %c0_i32_0 : i32, i32
  }
  func.func @transform_7(%arg0: i32) -> (i32, i32) {
    %c0_i32 = arith.constant 0 : i32
    %c0_i32_0 = arith.constant 0 : i32
    %c0_i32_1 = arith.constant 0 : i32
    return %c0_i32, %c0_i32_0 : i32, i32
  }
  func.func @transform_8(%arg0: i32) -> (i32, i32) {
    %c0_i32 = arith.constant 0 : i32
    %c0_i32_0 = arith.constant 0 : i32
    %c0_i32_1 = arith.constant 0 : i32
    return %c0_i32, %c0_i32_0 : i32, i32
  }
  func.func @transform_9(%arg0: i32) -> (i32, i32) {
    %c0_i32 = arith.constant 0 : i32
    %c0_i32_0 = arith.constant 0 : i32
    %c0_i32_1 = arith.constant 0 : i32
    return %c0_i32, %c0_i32_0 : i32, i32
  }
  func.func @transform_10(%arg0: i32) -> (i32, i32) {
    %c0_i32 = arith.constant 0 : i32
    %c0_i32_0 = arith.constant 0 : i32
    %c0_i32_1 = arith.constant 0 : i32
    return %c0_i32, %c0_i32_0 : i32, i32
  }
  func.func @transform_11(%arg0: i32) -> (i32, i32) {
    %c0_i32 = arith.constant 0 : i32
    %c0_i32_0 = arith.constant 0 : i32
    return %c0_i32, %arg0 : i32, i32
  }
}

</mosaic_0001>

<llo_original>
// kernel: tpu_custom_call.1
$region0: #{tpu_custom_call.1}
  #allocation0 [shape = 'u32[]', space=smem, size = 0x4, offset = 0x4, fixed_abs, tag = 'smem constant byte address 0x4 - core index']
  #allocation1 [shape = 'u32[144,128]{1,0:T(1,128)}', space=vmem, size = 0x12000, scoped, tag = 'internal scratch']
  #allocation2 [shape = 'f32[1,1]{1,0:T(1,128)S(1)}', space=vmem, size = 0x200, scoped, tag = 'scoped memory for tpu_custom_call.1']
  %s0 = inlined_call_operand.vmem [shape: f32[33,128], index: 0, kind: input, shape index: {}]
  %s1 = inlined_call_operand.vmem [shape: f32[50,33], index: 1, kind: input, shape index: {}]
  %s2 = inlined_call_operand.vmem [shape: f32[50,1], index: 2, kind: input, shape index: {}]
  %s3 = inlined_call_operand.vmem [shape: f32[80,50], index: 3, kind: input, shape index: {}]
  %s4 = inlined_call_operand.vmem [shape: f32[80,1], index: 4, kind: input, shape index: {}]
  %s5 = inlined_call_operand.vmem [shape: f32[100,80], index: 5, kind: input, shape index: {}]
  %s6 = inlined_call_operand.vmem [shape: f32[100,1], index: 6, kind: input, shape index: {}]
  %s7 = inlined_call_operand.vmem [shape: f32[50,100], index: 7, kind: input, shape index: {}]
  %s8 = inlined_call_operand.vmem [shape: f32[50,1], index: 8, kind: input, shape index: {}]
  %s9 = inlined_call_operand.vmem [shape: f32[1,50], index: 9, kind: input, shape index: {}]
  %s10 = inlined_call_operand.<no memory space> [shape: f32[1,1], index: 10, kind: input, shape index: {}]
  %s11 = inlined_call_operand.hbm [shape: f32[1,128], index: 11, kind: output, shape index: {}]
  %s12 = sld [smem:[#allocation0]]
  $region54: #{tpu_custom_call.1} parent=0
    _
  %s14 = ssub.s32 1, %s12
  %s15 = scalar_select 0, %s14, %s12
  %v16 = vstv %s10
  %17 = vst [vmem:[#allocation2] sm:$0x1] %v16
  $region1: #{tpu_custom_call.1} parent=0
    #allocation3 [shape = 'u8[512]{0}', space=vmem, size = 0x400, scoped, tag = 'output window, operand 0, single buffered']
    #allocation4 [shape = 's32[1]{0}', space=sflag, size = 0x4, scoped, tag = 'scoped memory for tpu_custom_call.1']
    %18 = vsyncpa [#allocation4], 0
    // Predicated region
    $region2: #{tpu_custom_call.1} parent=1 // pred_check
      _
    $region3: #{tpu_custom_call.1} parent=1 // pred_check_branch
      %20 = sbr.rel (0) target = $region5
    $region4: #{tpu_custom_call.1} parent=1 // pred_region
      _
    $region5: #{tpu_custom_call.1} parent=1 // pred_fallthru
      _
    // Predicated region
    $region6: #{tpu_custom_call.1} parent=1 // pred_check
      _
    $region7: #{tpu_custom_call.1} parent=1 // pred_check_branch
      %22 = sbr.rel (0) target = $region9
    $region8: #{tpu_custom_call.1} parent=1 // pred_region
      _
    $region9: #{tpu_custom_call.1} parent=1 // pred_fallthru
      _
    // Predicated region
    $region10: #{tpu_custom_call.1} parent=1 // pred_check
      _
    $region11: #{tpu_custom_call.1} parent=1 // pred_check_branch
      %24 = sbr.rel (0) target = $region13
    $region12: #{tpu_custom_call.1} parent=1 // pred_region
      _
    $region13: #{tpu_custom_call.1} parent=1 // pred_fallthru
      _
    // Predicated region
    $region14: #{tpu_custom_call.1} parent=1 // pred_check
      _
    $region15: #{tpu_custom_call.1} parent=1 // pred_check_branch
      %26 = sbr.rel (0) target = $region17
    $region16: #{tpu_custom_call.1} parent=1 // pred_region
      _
    $region17: #{tpu_custom_call.1} parent=1 // pred_fallthru
      _
    // Predicated region
    $region18: #{tpu_custom_call.1} parent=1 // pred_check
      _
    $region19: #{tpu_custom_call.1} parent=1 // pred_check_branch
      %28 = sbr.rel (0) target = $region21
    $region20: #{tpu_custom_call.1} parent=1 // pred_region
      _
    $region21: #{tpu_custom_call.1} parent=1 // pred_fallthru
      _
    // Predicated region
    $region22: #{tpu_custom_call.1} parent=1 // pred_check
      _
    $region23: #{tpu_custom_call.1} parent=1 // pred_check_branch
      %30 = sbr.rel (0) target = $region25
    $region24: #{tpu_custom_call.1} parent=1 // pred_region
      _
    $region25: #{tpu_custom_call.1} parent=1 // pred_fallthru
      _
    // Predicated region
    $region26: #{tpu_custom_call.1} parent=1 // pred_check
      _
    $region27: #{tpu_custom_call.1} parent=1 // pred_check_branch
      %32 = sbr.rel (0) target = $region29
    $region28: #{tpu_custom_call.1} parent=1 // pred_region
      _
    $region29: #{tpu_custom_call.1} parent=1 // pred_fallthru
      _
    // Predicated region
    $region30: #{tpu_custom_call.1} parent=1 // pred_check
      _
    $region31: #{tpu_custom_call.1} parent=1 // pred_check_branch
      %34 = sbr.rel (0) target = $region33
    $region32: #{tpu_custom_call.1} parent=1 // pred_region
      _
    $region33: #{tpu_custom_call.1} parent=1 // pred_fallthru
      _
    // Predicated region
    $region34: #{tpu_custom_call.1} parent=1 // pred_check
      _
    $region35: #{tpu_custom_call.1} parent=1 // pred_check_branch
      %36 = sbr.rel (0) target = $region37
    $region36: #{tpu_custom_call.1} parent=1 // pred_region
      _
    $region37: #{tpu_custom_call.1} parent=1 // pred_fallthru
      _
    // Predicated region
    $region38: #{tpu_custom_call.1} parent=1 // pred_check
      _
    $region39: #{tpu_custom_call.1} parent=1 // pred_check_branch
      %38 = sbr.rel (0) target = $region41
    $region40: #{tpu_custom_call.1} parent=1 // pred_region
      _
    $region41: #{tpu_custom_call.1} parent=1 // pred_fallthru
      _
    // Predicated region
    $region42: #{tpu_custom_call.1} parent=1 // pred_check
      _
    $region43: #{tpu_custom_call.1} parent=1 // pred_check_branch
      %40 = sbr.rel (0) target = $region45
    $region44: #{tpu_custom_call.1} parent=1 // pred_region
      _
    $region45: #{tpu_custom_call.1} parent=1 // pred_fallthru
      _
    %v41 = vld [vmem:[%s0] sm:$0xff]
    %v42 = vld [vmem:[%s0 + $0x8] sm:$0xff]
    %v43 = vld [vmem:[%s0 + $0x10] sm:$0xff]
    %v44 = vld [vmem:[%s0 + $0x18] sm:$0xff]
    %v45 = vld [vmem:[%s0 + $0x20] sm:$0x1]
    %v46 = vld [vmem:[%s1] sm:$0xff]
    %v47 = vld [vmem:[%s1 + $0x8] sm:$0xff]
    %v48 = vld [vmem:[%s1 + $0x10] sm:$0xff]
    %v49 = vld [vmem:[%s1 + $0x18] sm:$0xff]
    %v50 = vld [vmem:[%s1 + $0x20] sm:$0xff]
    %v51 = vld [vmem:[%s1 + $0x28] sm:$0xff]
    %v52 = vld [vmem:[%s1 + $0x30] sm:$0x3]
    %v53 = vld [vmem:[%s2] sm:$0xff]
    %v54 = vld [vmem:[%s2 + $0x8] sm:$0xff]
    %v55 = vld [vmem:[%s2 + $0x10] sm:$0xff]
    %v56 = vld [vmem:[%s2 + $0x18] sm:$0xff]
    %v57 = vld [vmem:[%s2 + $0x20] sm:$0xff]
    %v58 = vld [vmem:[%s2 + $0x28] sm:$0xff]
    %v59 = vld [vmem:[%s2 + $0x30] sm:$0x3]
    %61 = vset.pattern.permute.xlu0 0
    %62 = vperm.xlu0 %61, %v53
    %v63 = vpop.permute.xlu0 %62
    %66 = vset.pattern.permute.xlu0 0
    %67 = vperm.xlu0 %66, %v54
    %v68 = vpop.permute.xlu0 %67
    %71 = vset.pattern.permute.xlu0 0
    %72 = vperm.xlu0 %71, %v55
    %v73 = vpop.permute.xlu0 %72
    %76 = vset.pattern.permute.xlu0 0
    %77 = vperm.xlu0 %76, %v56
    %v78 = vpop.permute.xlu0 %77
    %81 = vset.pattern.permute.xlu0 0
    %82 = vperm.xlu0 %81, %v57
    %v83 = vpop.permute.xlu0 %82
    %86 = vset.pattern.permute.xlu0 0
    %87 = vperm.xlu0 %86, %v58
    %v88 = vpop.permute.xlu0 %87
    %91 = vset.pattern.permute.xlu0 0
    %92 = vperm.xlu0 %91, %v59
    %v93 = vpop.permute.xlu0 %92
    %vm95 = vcmask 269312
    %v97 = vsel %vm95, %v46, 0
    %v100 = vsel %vm95, %v47, 0
    %v103 = vsel %vm95, %v48, 0
    %v106 = vsel %vm95, %v49, 0
    %v109 = vsel %vm95, %v50, 0
    %v112 = vsel %vm95, %v51, 0
    %v115 = vsel %vm95, %v52, 0
    %vm117 = vcmask 1040384
    %v119 = vsel %vm117, %v45, 0
    %121 = vmatprep.subr.mxu0 0.0
    %122 = vmatpush1.msra.mxu0 0.0
    %123 = vmatprep.subr.mxu0 0.0
    %124 = vmatpush1.msra.mxu0 0.0
    %125 = vmatprep.subr.mxu0 0.0
    %126 = vmatpush1.msra.mxu0 0.0
    %127 = vmatprep.subr.mxu0 0.0
    %128 = vmatpush1.msra.mxu0 0.0
    %129 = vmatprep.subr.mxu0 0.0
    %130 = vmatpush1.msra.mxu0 0.0
    %131 = vmatprep.subr.mxu0 0.0
    %132 = vmatpush1.msra.mxu0 0.0
    %133 = vmatprep.subr.mxu0 0.0
    %134 = vmatpush1.msra.mxu0 0.0
    %135 = vmatprep.subr.mxu0 0.0
    %136 = vmatpush1.msra.mxu0 0.0
    %137 = vmatprep.subr.mxu0 0.0
    %138 = vmatpush1.msra.mxu0 0.0
    %139 = vmatprep.subr.mxu0 0.0
    %140 = vmatpush1.msra.mxu0 0.0
    %141 = vmatprep.subr.mxu0 0.0
    %142 = vmatpush1.msra.mxu0 0.0
    %143 = vmatprep.subr.mxu0 0.0
    %144 = vmatpush1.msra.mxu0 %v119
    %145 = vmatprep.subr.mxu0 0.0
    %146 = vmatpush1.msra.mxu0 %v44
    %147 = vmatprep.subr.mxu0 0.0
    %148 = vmatpush1.msra.mxu0 %v43
    %149 = vmatprep.subr.mxu0 0.0
    %150 = vmatpush1.msra.mxu0 %v42
    %151 = vmatprep.subr.mxu0 0.0
    %152 = vmatpush1.msra.mxu0 %v41
    %153 = vmatprep.subr.mxu0 0.0
    %154 = vmatpush2.msra.mxu0 0.0
    %155 = vmatprep.subr.mxu0 0.0
    %156 = vmatpush2.msra.mxu0 0.0
    %157 = vmatprep.subr.mxu0 0.0
    %158 = vmatpush2.msra.mxu0 0.0
    %159 = vmatprep.subr.mxu0 0.0
    %160 = vmatpush2.msra.mxu0 0.0
    %161 = vmatprep.subr.mxu0 0.0
    %162 = vmatpush2.msra.mxu0 0.0
    %163 = vmatprep.subr.mxu0 0.0
    %164 = vmatpush2.msra.mxu0 0.0
    %165 = vmatprep.subr.mxu0 0.0
    %166 = vmatpush2.msra.mxu0 0.0
    %167 = vmatprep.subr.mxu0 0.0
    %168 = vmatpush2.msra.mxu0 0.0
    %169 = vmatprep.subr.mxu0 0.0
    %170 = vmatpush2.msra.mxu0 0.0
    %171 = vmatprep.subr.mxu0 0.0
    %172 = vmatpush2.msra.mxu0 0.0
    %173 = vmatprep.subr.mxu0 0.0
    %174 = vmatpush2.msra.mxu0 0.0
    %175 = vmatprep.subr.mxu0 0.0
    %176 = vmatpush2.msra.mxu0 0.0
    %177 = vmatprep.subr.mxu0 0.0
    %178 = vmatpush2.msra.mxu0 0.0
    %179 = vmatprep.subr.mxu0 0.0
    %180 = vmatpush2.msra.mxu0 0.0
    %181 = vmatprep.subr.mxu0 0.0
    %182 = vmatpush2.msra.mxu0 0.0
    %183 = vmatprep.subr.mxu0 0.0
    %184 = vmatpush2.msra.mxu0 0.0
    %185 = vmatprep.mubr.f32.mxu0 0.0
    %186 = vmatmul.mubr.f32.gmra.mxu0 %v97
    %v187 = vpop.f32.mrf.mxu0
    %v188 = vadd.f32 %v63, %v187
    %v189 = vpop.f32.mrf.mxu0
    %190 = vmatprep.mubr.f32.mxu0 0.0
    %191 = vmatmul.mubr.f32.gmra.mxu0 %v100
    %v192 = vpop.f32.mrf.mxu0
    %v193 = vadd.f32 %v68, %v192
    %v194 = vpop.f32.mrf.mxu0
    %195 = vmatprep.mubr.f32.mxu0 0.0
    %196 = vmatmul.mubr.f32.gmra.mxu0 %v103
    %v197 = vpop.f32.mrf.mxu0
    %v198 = vadd.f32 %v73, %v197
    %v199 = vpop.f32.mrf.mxu0
    %200 = vmatprep.mubr.f32.mxu0 0.0
    %201 = vmatmul.mubr.f32.gmra.mxu0 %v106
    %v202 = vpop.f32.mrf.mxu0
    %v203 = vadd.f32 %v78, %v202
    %v204 = vpop.f32.mrf.mxu0
    %205 = vmatprep.mubr.f32.mxu0 0.0
    %206 = vmatmul.mubr.f32.gmra.mxu0 %v109
    %v207 = vpop.f32.mrf.mxu0
    %v208 = vadd.f32 %v83, %v207
    %v209 = vpop.f32.mrf.mxu0
    %210 = vmatprep.mubr.f32.mxu0 0.0
    %211 = vmatmul.mubr.f32.gmra.mxu0 %v112
    %v212 = vpop.f32.mrf.mxu0
    %v213 = vadd.f32 %v88, %v212
    %v214 = vpop.f32.mrf.mxu0
    %215 = vmatprep.mubr.f32.mxu0 0.0
    %216 = vmatmul.mubr.f32.gmra.mxu0 %v115
    %v217 = vpop.f32.mrf.mxu0
    %v218 = vadd.f32 %v93, %v217
    %v219 = vpop.f32.mrf.mxu0
    %220 = vdwg.mxu0
    %v221 = vmax.f32 %v188, 0.0
    %v222 = vmax.f32 %v193, 0.0
    %v223 = vmax.f32 %v198, 0.0
    %v224 = vmax.f32 %v203, 0.0
    %v225 = vmax.f32 %v208, 0.0
    %v226 = vmax.f32 %v213, 0.0
    %v227 = vmax.f32 %v218, 0.0
    %v228 = vld [vmem:[%s3] sm:$0xff]
    %v229 = vld [vmem:[%s3 + $0x8] sm:$0xff]
    %v230 = vld [vmem:[%s3 + $0x10] sm:$0xff]
    %v231 = vld [vmem:[%s3 + $0x18] sm:$0xff]
    %v232 = vld [vmem:[%s3 + $0x20] sm:$0xff]
    %v233 = vld [vmem:[%s3 + $0x28] sm:$0xff]
    %v234 = vld [vmem:[%s3 + $0x30] sm:$0xff]
    %v235 = vld [vmem:[%s3 + $0x38] sm:$0xff]
    %v236 = vld [vmem:[%s3 + $0x40] sm:$0xff]
    %v237 = vld [vmem:[%s3 + $0x48] sm:$0xff]
    %v238 = vld [vmem:[%s4] sm:$0xff]
    %v239 = vld [vmem:[%s4 + $0x8] sm:$0xff]
    %v240 = vld [vmem:[%s4 + $0x10] sm:$0xff]
    %v241 = vld [vmem:[%s4 + $0x18] sm:$0xff]
    %v242 = vld [vmem:[%s4 + $0x20] sm:$0xff]
    %v243 = vld [vmem:[%s4 + $0x28] sm:$0xff]
    %v244 = vld [vmem:[%s4 + $0x30] sm:$0xff]
    %v245 = vld [vmem:[%s4 + $0x38] sm:$0xff]
    %v246 = vld [vmem:[%s4 + $0x40] sm:$0xff]
    %v247 = vld [vmem:[%s4 + $0x48] sm:$0xff]
    %249 = vset.pattern.permute.xlu0 0
    %250 = vperm.xlu0 %249, %v238
    %v251 = vpop.permute.xlu0 %250
    %254 = vset.pattern.permute.xlu0 0
    %255 = vperm.xlu0 %254, %v239
    %v256 = vpop.permute.xlu0 %255
    %259 = vset.pattern.permute.xlu0 0
    %260 = vperm.xlu0 %259, %v240
    %v261 = vpop.permute.xlu0 %260
    %264 = vset.pattern.permute.xlu0 0
    %265 = vperm.xlu0 %264, %v241
    %v266 = vpop.permute.xlu0 %265
    %269 = vset.pattern.permute.xlu0 0
    %270 = vperm.xlu0 %269, %v242
    %v271 = vpop.permute.xlu0 %270
    %274 = vset.pattern.permute.xlu0 0
    %275 = vperm.xlu0 %274, %v243
    %v276 = vpop.permute.xlu0 %275
    %279 = vset.pattern.permute.xlu0 0
    %280 = vperm.xlu0 %279, %v244
    %v281 = vpop.permute.xlu0 %280
    %284 = vset.pattern.permute.xlu0 0
    %285 = vperm.xlu0 %284, %v245
    %v286 = vpop.permute.xlu0 %285
    %289 = vset.pattern.permute.xlu0 0
    %290 = vperm.xlu0 %289, %v246
    %v291 = vpop.permute.xlu0 %290
    %294 = vset.pattern.permute.xlu0 0
    %295 = vperm.xlu0 %294, %v247
    %v296 = vpop.permute.xlu0 %295
    %vm298 = vcmask 408576
    %v300 = vsel %vm298, %v228, 0
    %v303 = vsel %vm298, %v229, 0
    %v306 = vsel %vm298, %v230, 0
    %v309 = vsel %vm298, %v231, 0
    %v312 = vsel %vm298, %v232, 0
    %v315 = vsel %vm298, %v233, 0
    %v318 = vsel %vm298, %v234, 0
    %v321 = vsel %vm298, %v235, 0
    %v324 = vsel %vm298, %v236, 0
    %v327 = vsel %vm298, %v237, 0
    %vm329 = vcmask 1041408
    %v331 = vsel %vm329, %v227, 0
    %333 = vmatprep.subr.mxu0 0.0
    %334 = vmatpush1.msra.mxu0 0.0
    %335 = vmatprep.subr.mxu0 0.0
    %336 = vmatpush1.msra.mxu0 0.0
    %337 = vmatprep.subr.mxu0 0.0
    %338 = vmatpush1.msra.mxu0 0.0
    %339 = vmatprep.subr.mxu0 0.0
    %340 = vmatpush1.msra.mxu0 0.0
    %341 = vmatprep.subr.mxu0 0.0
    %342 = vmatpush1.msra.mxu0 0.0
    %343 = vmatprep.subr.mxu0 0.0
    %344 = vmatpush1.msra.mxu0 0.0
    %345 = vmatprep.subr.mxu0 0.0
    %346 = vmatpush1.msra.mxu0 0.0
    %347 = vmatprep.subr.mxu0 0.0
    %348 = vmatpush1.msra.mxu0 0.0
    %349 = vmatprep.subr.mxu0 0.0
    %350 = vmatpush1.msra.mxu0 0.0
    %351 = vmatprep.subr.mxu0 0.0
    %352 = vmatpush1.msra.mxu0 %v331
    %353 = vmatprep.subr.mxu0 0.0
    %354 = vmatpush1.msra.mxu0 %v226
    %355 = vmatprep.subr.mxu0 0.0
    %356 = vmatpush1.msra.mxu0 %v225
    %357 = vmatprep.subr.mxu0 0.0
    %358 = vmatpush1.msra.mxu0 %v224
    %359 = vmatprep.subr.mxu0 0.0
    %360 = vmatpush1.msra.mxu0 %v223
    %361 = vmatprep.subr.mxu0 0.0
    %362 = vmatpush1.msra.mxu0 %v222
    %363 = vmatprep.subr.mxu0 0.0
    %364 = vmatpush1.msra.mxu0 %v221
    %365 = vmatprep.subr.mxu0 0.0
    %366 = vmatpush2.msra.mxu0 0.0
    %367 = vmatprep.subr.mxu0 0.0
    %368 = vmatpush2.msra.mxu0 0.0
    %369 = vmatprep.subr.mxu0 0.0
    %370 = vmatpush2.msra.mxu0 0.0
    %371 = vmatprep.subr.mxu0 0.0
    %372 = vmatpush2.msra.mxu0 0.0
    %373 = vmatprep.subr.mxu0 0.0
    %374 = vmatpush2.msra.mxu0 0.0
    %375 = vmatprep.subr.mxu0 0.0
    %376 = vmatpush2.msra.mxu0 0.0
    %377 = vmatprep.subr.mxu0 0.0
    %378 = vmatpush2.msra.mxu0 0.0
    %379 = vmatprep.subr.mxu0 0.0
    %380 = vmatpush2.msra.mxu0 0.0
    %381 = vmatprep.subr.mxu0 0.0
    %382 = vmatpush2.msra.mxu0 0.0
    %383 = vmatprep.subr.mxu0 0.0
    %384 = vmatpush2.msra.mxu0 0.0
    %385 = vmatprep.subr.mxu0 0.0
    %386 = vmatpush2.msra.mxu0 0.0
    %387 = vmatprep.subr.mxu0 0.0
    %388 = vmatpush2.msra.mxu0 0.0
    %389 = vmatprep.subr.mxu0 0.0
    %390 = vmatpush2.msra.mxu0 0.0
    %391 = vmatprep.subr.mxu0 0.0
    %392 = vmatpush2.msra.mxu0 0.0
    %393 = vmatprep.subr.mxu0 0.0
    %394 = vmatpush2.msra.mxu0 0.0
    %395 = vmatprep.subr.mxu0 0.0
    %396 = vmatpush2.msra.mxu0 0.0
    %397 = vmatprep.mubr.f32.mxu0 0.0
    %398 = vmatmul.mubr.f32.gmra.mxu0 %v300
    %v399 = vpop.f32.mrf.mxu0
    %v400 = vadd.f32 %v251, %v399
    %v401 = vpop.f32.mrf.mxu0
    %402 = vmatprep.mubr.f32.mxu0 0.0
    %403 = vmatmul.mubr.f32.gmra.mxu0 %v303
    %v404 = vpop.f32.mrf.mxu0
    %v405 = vadd.f32 %v256, %v404
    %v406 = vpop.f32.mrf.mxu0
    %407 = vmatprep.mubr.f32.mxu0 0.0
    %408 = vmatmul.mubr.f32.gmra.mxu0 %v306
    %v409 = vpop.f32.mrf.mxu0
    %v410 = vadd.f32 %v261, %v409
    %v411 = vpop.f32.mrf.mxu0
    %412 = vmatprep.mubr.f32.mxu0 0.0
    %413 = vmatmul.mubr.f32.gmra.mxu0 %v309
    %v414 = vpop.f32.mrf.mxu0
    %v415 = vadd.f32 %v266, %v414
    %v416 = vpop.f32.mrf.mxu0
    %417 = vmatprep.mubr.f32.mxu0 0.0
    %418 = vmatmul.mubr.f32.gmra.mxu0 %v312
    %v419 = vpop.f32.mrf.mxu0
    %v420 = vadd.f32 %v271, %v419
    %v421 = vpop.f32.mrf.mxu0
    %422 = vmatprep.mubr.f32.mxu0 0.0
    %423 = vmatmul.mubr.f32.gmra.mxu0 %v315
    %v424 = vpop.f32.mrf.mxu0
    %v425 = vadd.f32 %v276, %v424
    %v426 = vpop.f32.mrf.mxu0
    %427 = vmatprep.mubr.f32.mxu0 0.0
    %428 = vmatmul.mubr.f32.gmra.mxu0 %v318
    %v429 = vpop.f32.mrf.mxu0
    %v430 = vadd.f32 %v281, %v429
    %v431 = vpop.f32.mrf.mxu0
    %432 = vmatprep.mubr.f32.mxu0 0.0
    %433 = vmatmul.mubr.f32.gmra.mxu0 %v321
    %v434 = vpop.f32.mrf.mxu0
    %v435 = vadd.f32 %v286, %v434
    %v436 = vpop.f32.mrf.mxu0
    %437 = vmatprep.mubr.f32.mxu0 0.0
    %438 = vmatmul.mubr.f32.gmra.mxu0 %v324
    %v439 = vpop.f32.mrf.mxu0
    %v440 = vadd.f32 %v291, %v439
    %v441 = vpop.f32.mrf.mxu0
    %442 = vmatprep.mubr.f32.mxu0 0.0
    %443 = vmatmul.mubr.f32.gmra.mxu0 %v327
    %v444 = vpop.f32.mrf.mxu0
    %v445 = vadd.f32 %v296, %v444
    %v446 = vpop.f32.mrf.mxu0
    %447 = vdwg.mxu0
    %v448 = vmax.f32 %v400, 0.0
    %v449 = vmax.f32 %v405, 0.0
    %v450 = vmax.f32 %v410, 0.0
    %v451 = vmax.f32 %v415, 0.0
    %v452 = vmax.f32 %v420, 0.0
    %v453 = vmax.f32 %v425, 0.0
    %v454 = vmax.f32 %v430, 0.0
    %v455 = vmax.f32 %v435, 0.0
    %v456 = vmax.f32 %v440, 0.0
    %v457 = vmax.f32 %v445, 0.0
    %v458 = vld [vmem:[%s5] sm:$0xff]
    %v459 = vld [vmem:[%s5 + $0x8] sm:$0xff]
    %v460 = vld [vmem:[%s5 + $0x10] sm:$0xff]
    %v461 = vld [vmem:[%s5 + $0x18] sm:$0xff]
    %v462 = vld [vmem:[%s5 + $0x20] sm:$0xff]
    %v463 = vld [vmem:[%s5 + $0x28] sm:$0xff]
    %v464 = vld [vmem:[%s5 + $0x30] sm:$0xff]
    %v465 = vld [vmem:[%s5 + $0x38] sm:$0xff]
    %v466 = vld [vmem:[%s5 + $0x40] sm:$0xff]
    %v467 = vld [vmem:[%s5 + $0x48] sm:$0xff]
    %v468 = vld [vmem:[%s5 + $0x50] sm:$0xff]
    %v469 = vld [vmem:[%s5 + $0x58] sm:$0xff]
    %v470 = vld [vmem:[%s5 + $0x60] sm:$0xf]
    %v471 = vld [vmem:[%s6] sm:$0xff]
    %v472 = vld [vmem:[%s6 + $0x8] sm:$0xff]
    %v473 = vld [vmem:[%s6 + $0x10] sm:$0xff]
    %v474 = vld [vmem:[%s6 + $0x18] sm:$0xff]
    %v475 = vld [vmem:[%s6 + $0x20] sm:$0xff]
    %v476 = vld [vmem:[%s6 + $0x28] sm:$0xff]
    %v477 = vld [vmem:[%s6 + $0x30] sm:$0xff]
    %v478 = vld [vmem:[%s6 + $0x38] sm:$0xff]
    %v479 = vld [vmem:[%s6 + $0x40] sm:$0xff]
    %v480 = vld [vmem:[%s6 + $0x48] sm:$0xff]
    %v481 = vld [vmem:[%s6 + $0x50] sm:$0xff]
    %v482 = vld [vmem:[%s6 + $0x58] sm:$0xff]
    %v483 = vld [vmem:[%s6 + $0x60] sm:$0xf]
    %485 = vset.pattern.permute.xlu0 0
    %486 = vperm.xlu0 %485, %v471
    %v487 = vpop.permute.xlu0 %486
    %490 = vset.pattern.permute.xlu0 0
    %491 = vperm.xlu0 %490, %v472
    %v492 = vpop.permute.xlu0 %491
    %495 = vset.pattern.permute.xlu0 0
    %496 = vperm.xlu0 %495, %v473
    %v497 = vpop.permute.xlu0 %496
    %500 = vset.pattern.permute.xlu0 0
    %501 = vperm.xlu0 %500, %v474
    %v502 = vpop.permute.xlu0 %501
    %505 = vset.pattern.permute.xlu0 0
    %506 = vperm.xlu0 %505, %v475
    %v507 = vpop.permute.xlu0 %506
    %510 = vset.pattern.permute.xlu0 0
    %511 = vperm.xlu0 %510, %v476
    %v512 = vpop.permute.xlu0 %511
    %515 = vset.pattern.permute.xlu0 0
    %516 = vperm.xlu0 %515, %v477
    %v517 = vpop.permute.xlu0 %516
    %520 = vset.pattern.permute.xlu0 0
    %521 = vperm.xlu0 %520, %v478
    %v522 = vpop.permute.xlu0 %521
    %525 = vset.pattern.permute.xlu0 0
    %526 = vperm.xlu0 %525, %v479
    %v527 = vpop.permute.xlu0 %526
    %530 = vset.pattern.permute.xlu0 0
    %531 = vperm.xlu0 %530, %v480
    %v532 = vpop.permute.xlu0 %531
    %535 = vset.pattern.permute.xlu0 0
    %536 = vperm.xlu0 %535, %v481
    %v537 = vpop.permute.xlu0 %536
    %540 = vset.pattern.permute.xlu0 0
    %541 = vperm.xlu0 %540, %v482
    %v542 = vpop.permute.xlu0 %541
    %545 = vset.pattern.permute.xlu0 0
    %546 = vperm.xlu0 %545, %v483
    %v547 = vpop.permute.xlu0 %546
    %vm549 = vcmask 654336
    %v551 = vsel %vm549, %v458, 0
    %v554 = vsel %vm549, %v459, 0
    %v557 = vsel %vm549, %v460, 0
    %v560 = vsel %vm549, %v461, 0
    %v563 = vsel %vm549, %v462, 0
    %v566 = vsel %vm549, %v463, 0
    %v569 = vsel %vm549, %v464, 0
    %v572 = vsel %vm549, %v465, 0
    %v575 = vsel %vm549, %v466, 0
    %v578 = vsel %vm549, %v467, 0
    %v581 = vsel %vm549, %v468, 0
    %v584 = vsel %vm549, %v469, 0
    %v587 = vsel %vm549, %v470, 0
    %589 = vmatprep.subr.mxu0 0.0
    %590 = vmatpush1.msra.mxu0 0.0
    %591 = vmatprep.subr.mxu0 0.0
    %592 = vmatpush1.msra.mxu0 0.0
    %593 = vmatprep.subr.mxu0 0.0
    %594 = vmatpush1.msra.mxu0 0.0
    %595 = vmatprep.subr.mxu0 0.0
    %596 = vmatpush1.msra.mxu0 0.0
    %597 = vmatprep.subr.mxu0 0.0
    %598 = vmatpush1.msra.mxu0 0.0
    %599 = vmatprep.subr.mxu0 0.0
    %600 = vmatpush1.msra.mxu0 0.0
    %601 = vmatprep.subr.mxu0 0.0
    %602 = vmatpush1.msra.mxu0 %v457
    %603 = vmatprep.subr.mxu0 0.0
    %604 = vmatpush1.msra.mxu0 %v456
    %605 = vmatprep.subr.mxu0 0.0
    %606 = vmatpush1.msra.mxu0 %v455
    %607 = vmatprep.subr.mxu0 0.0
    %608 = vmatpush1.msra.mxu0 %v454
    %609 = vmatprep.subr.mxu0 0.0
    %610 = vmatpush1.msra.mxu0 %v453
    %611 = vmatprep.subr.mxu0 0.0
    %612 = vmatpush1.msra.mxu0 %v452
    %613 = vmatprep.subr.mxu0 0.0
    %614 = vmatpush1.msra.mxu0 %v451
    %615 = vmatprep.subr.mxu0 0.0
    %616 = vmatpush1.msra.mxu0 %v450
    %617 = vmatprep.subr.mxu0 0.0
    %618 = vmatpush1.msra.mxu0 %v449
    %619 = vmatprep.subr.mxu0 0.0
    %620 = vmatpush1.msra.mxu0 %v448
    %621 = vmatprep.subr.mxu0 0.0
    %622 = vmatpush2.msra.mxu0 0.0
    %623 = vmatprep.subr.mxu0 0.0
    %624 = vmatpush2.msra.mxu0 0.0
    %625 = vmatprep.subr.mxu0 0.0
    %626 = vmatpush2.msra.mxu0 0.0
    %627 = vmatprep.subr.mxu0 0.0
    %628 = vmatpush2.msra.mxu0 0.0
    %629 = vmatprep.subr.mxu0 0.0
    %630 = vmatpush2.msra.mxu0 0.0
    %631 = vmatprep.subr.mxu0 0.0
    %632 = vmatpush2.msra.mxu0 0.0
    %633 = vmatprep.subr.mxu0 0.0
    %634 = vmatpush2.msra.mxu0 0.0
    %635 = vmatprep.subr.mxu0 0.0
    %636 = vmatpush2.msra.mxu0 0.0
    %637 = vmatprep.subr.mxu0 0.0
    %638 = vmatpush2.msra.mxu0 0.0
    %639 = vmatprep.subr.mxu0 0.0
    %640 = vmatpush2.msra.mxu0 0.0
    %641 = vmatprep.subr.mxu0 0.0
    %642 = vmatpush2.msra.mxu0 0.0
    %643 = vmatprep.subr.mxu0 0.0
    %644 = vmatpush2.msra.mxu0 0.0
    %645 = vmatprep.subr.mxu0 0.0
    %646 = vmatpush2.msra.mxu0 0.0
    %647 = vmatprep.subr.mxu0 0.0
    %648 = vmatpush2.msra.mxu0 0.0
    %649 = vmatprep.subr.mxu0 0.0
    %650 = vmatpush2.msra.mxu0 0.0
    %651 = vmatprep.subr.mxu0 0.0
    %652 = vmatpush2.msra.mxu0 0.0
    %653 = vmatprep.mubr.f32.mxu0 0.0
    %654 = vmatmul.mubr.f32.gmra.mxu0 %v551
    %v655 = vpop.f32.mrf.mxu0
    %v656 = vadd.f32 %v487, %v655
    %v657 = vpop.f32.mrf.mxu0
    %658 = vmatprep.mubr.f32.mxu0 0.0
    %659 = vmatmul.mubr.f32.gmra.mxu0 %v554
    %v660 = vpop.f32.mrf.mxu0
    %v661 = vadd.f32 %v492, %v660
    %v662 = vpop.f32.mrf.mxu0
    %663 = vmatprep.mubr.f32.mxu0 0.0
    %664 = vmatmul.mubr.f32.gmra.mxu0 %v557
    %v665 = vpop.f32.mrf.mxu0
    %v666 = vadd.f32 %v497, %v665
    %v667 = vpop.f32.mrf.mxu0
    %668 = vmatprep.mubr.f32.mxu0 0.0
    %669 = vmatmul.mubr.f32.gmra.mxu0 %v560
    %v670 = vpop.f32.mrf.mxu0
    %v671 = vadd.f32 %v502, %v670
    %v672 = vpop.f32.mrf.mxu0
    %673 = vmatprep.mubr.f32.mxu0 0.0
    %674 = vmatmul.mubr.f32.gmra.mxu0 %v563
    %v675 = vpop.f32.mrf.mxu0
    %v676 = vadd.f32 %v507, %v675
    %v677 = vpop.f32.mrf.mxu0
    %678 = vmatprep.mubr.f32.mxu0 0.0
    %679 = vmatmul.mubr.f32.gmra.mxu0 %v566
    %v680 = vpop.f32.mrf.mxu0
    %v681 = vadd.f32 %v512, %v680
    %v682 = vpop.f32.mrf.mxu0
    %683 = vmatprep.mubr.f32.mxu0 0.0
    %684 = vmatmul.mubr.f32.gmra.mxu0 %v569
    %v685 = vpop.f32.mrf.mxu0
    %v686 = vadd.f32 %v517, %v685
    %v687 = vpop.f32.mrf.mxu0
    %688 = vmatprep.mubr.f32.mxu0 0.0
    %689 = vmatmul.mubr.f32.gmra.mxu0 %v572
    %v690 = vpop.f32.mrf.mxu0
    %v691 = vadd.f32 %v522, %v690
    %v692 = vpop.f32.mrf.mxu0
    %693 = vmatprep.mubr.f32.mxu0 0.0
    %694 = vmatmul.mubr.f32.gmra.mxu0 %v575
    %v695 = vpop.f32.mrf.mxu0
    %v696 = vadd.f32 %v527, %v695
    %v697 = vpop.f32.mrf.mxu0
    %698 = vmatprep.mubr.f32.mxu0 0.0
    %699 = vmatmul.mubr.f32.gmra.mxu0 %v578
    %v700 = vpop.f32.mrf.mxu0
    %v701 = vadd.f32 %v532, %v700
    %v702 = vpop.f32.mrf.mxu0
    %703 = vmatprep.mubr.f32.mxu0 0.0
    %704 = vmatmul.mubr.f32.gmra.mxu0 %v581
    %v705 = vpop.f32.mrf.mxu0
    %v706 = vadd.f32 %v537, %v705
    %v707 = vpop.f32.mrf.mxu0
    %708 = vmatprep.mubr.f32.mxu0 0.0
    %709 = vmatmul.mubr.f32.gmra.mxu0 %v584
    %v710 = vpop.f32.mrf.mxu0
    %v711 = vadd.f32 %v542, %v710
    %v712 = vpop.f32.mrf.mxu0
    %713 = vmatprep.mubr.f32.mxu0 0.0
    %714 = vmatmul.mubr.f32.gmra.mxu0 %v587
    %v715 = vpop.f32.mrf.mxu0
    %v716 = vadd.f32 %v547, %v715
    %v717 = vpop.f32.mrf.mxu0
    %718 = vdwg.mxu0
    %v719 = vmax.f32 %v656, 0.0
    %v720 = vmax.f32 %v661, 0.0
    %v721 = vmax.f32 %v666, 0.0
    %v722 = vmax.f32 %v671, 0.0
    %v723 = vmax.f32 %v676, 0.0
    %v724 = vmax.f32 %v681, 0.0
    %v725 = vmax.f32 %v686, 0.0
    %v726 = vmax.f32 %v691, 0.0
    %v727 = vmax.f32 %v696, 0.0
    %v728 = vmax.f32 %v701, 0.0
    %v729 = vmax.f32 %v706, 0.0
    %v730 = vmax.f32 %v711, 0.0
    %v731 = vmax.f32 %v716, 0.0
    %v732 = vld [vmem:[%s7] sm:$0xff]
    %v733 = vld [vmem:[%s7 + $0x8] sm:$0xff]
    %v734 = vld [vmem:[%s7 + $0x10] sm:$0xff]
    %v735 = vld [vmem:[%s7 + $0x18] sm:$0xff]
    %v736 = vld [vmem:[%s7 + $0x20] sm:$0xff]
    %v737 = vld [vmem:[%s7 + $0x28] sm:$0xff]
    %v738 = vld [vmem:[%s7 + $0x30] sm:$0x3]
    %v739 = vld [vmem:[%s8] sm:$0xff]
    %v740 = vld [vmem:[%s8 + $0x8] sm:$0xff]
    %v741 = vld [vmem:[%s8 + $0x10] sm:$0xff]
    %v742 = vld [vmem:[%s8 + $0x18] sm:$0xff]
    %v743 = vld [vmem:[%s8 + $0x20] sm:$0xff]
    %v744 = vld [vmem:[%s8 + $0x28] sm:$0xff]
    %v745 = vld [vmem:[%s8 + $0x30] sm:$0x3]
    %747 = vset.pattern.permute.xlu0 0
    %748 = vperm.xlu0 %747, %v739
    %v749 = vpop.permute.xlu0 %748
    %752 = vset.pattern.permute.xlu0 0
    %753 = vperm.xlu0 %752, %v740
    %v754 = vpop.permute.xlu0 %753
    %757 = vset.pattern.permute.xlu0 0
    %758 = vperm.xlu0 %757, %v741
    %v759 = vpop.permute.xlu0 %758
    %762 = vset.pattern.permute.xlu0 0
    %763 = vperm.xlu0 %762, %v742
    %v764 = vpop.permute.xlu0 %763
    %767 = vset.pattern.permute.xlu0 0
    %768 = vperm.xlu0 %767, %v743
    %v769 = vpop.permute.xlu0 %768
    %772 = vset.pattern.permute.xlu0 0
    %773 = vperm.xlu0 %772, %v744
    %v774 = vpop.permute.xlu0 %773
    %777 = vset.pattern.permute.xlu0 0
    %778 = vperm.xlu0 %777, %v745
    %v779 = vpop.permute.xlu0 %778
    %vm781 = vcmask 818176
    %v783 = vsel %vm781, %v732, 0
    %v786 = vsel %vm781, %v733, 0
    %v789 = vsel %vm781, %v734, 0
    %v792 = vsel %vm781, %v735, 0
    %v795 = vsel %vm781, %v736, 0
    %v798 = vsel %vm781, %v737, 0
    %v801 = vsel %vm781, %v738, 0
    %vm803 = vcmask 1043456
    %v805 = vsel %vm803, %v731, 0
    %807 = vmatprep.subr.mxu0 0.0
    %808 = vmatpush1.msra.mxu0 0.0
    %809 = vmatprep.subr.mxu0 0.0
    %810 = vmatpush1.msra.mxu0 0.0
    %811 = vmatprep.subr.mxu0 0.0
    %812 = vmatpush1.msra.mxu0 0.0
    %813 = vmatprep.subr.mxu0 0.0
    %814 = vmatpush1.msra.mxu0 %v805
    %815 = vmatprep.subr.mxu0 0.0
    %816 = vmatpush1.msra.mxu0 %v730
    %817 = vmatprep.subr.mxu0 0.0
    %818 = vmatpush1.msra.mxu0 %v729
    %819 = vmatprep.subr.mxu0 0.0
    %820 = vmatpush1.msra.mxu0 %v728
    %821 = vmatprep.subr.mxu0 0.0
    %822 = vmatpush1.msra.mxu0 %v727
    %823 = vmatprep.subr.mxu0 0.0
    %824 = vmatpush1.msra.mxu0 %v726
    %825 = vmatprep.subr.mxu0 0.0
    %826 = vmatpush1.msra.mxu0 %v725
    %827 = vmatprep.subr.mxu0 0.0
    %828 = vmatpush1.msra.mxu0 %v724
    %829 = vmatprep.subr.mxu0 0.0
    %830 = vmatpush1.msra.mxu0 %v723
    %831 = vmatprep.subr.mxu0 0.0
    %832 = vmatpush1.msra.mxu0 %v722
    %833 = vmatprep.subr.mxu0 0.0
    %834 = vmatpush1.msra.mxu0 %v721
    %835 = vmatprep.subr.mxu0 0.0
    %836 = vmatpush1.msra.mxu0 %v720
    %837 = vmatprep.subr.mxu0 0.0
    %838 = vmatpush1.msra.mxu0 %v719
    %839 = vmatprep.subr.mxu0 0.0
    %840 = vmatpush2.msra.mxu0 0.0
    %841 = vmatprep.subr.mxu0 0.0
    %842 = vmatpush2.msra.mxu0 0.0
    %843 = vmatprep.subr.mxu0 0.0
    %844 = vmatpush2.msra.mxu0 0.0
    %845 = vmatprep.subr.mxu0 0.0
    %846 = vmatpush2.msra.mxu0 0.0
    %847 = vmatprep.subr.mxu0 0.0
    %848 = vmatpush2.msra.mxu0 0.0
    %849 = vmatprep.subr.mxu0 0.0
    %850 = vmatpush2.msra.mxu0 0.0
    %851 = vmatprep.subr.mxu0 0.0
    %852 = vmatpush2.msra.mxu0 0.0
    %853 = vmatprep.subr.mxu0 0.0
    %854 = vmatpush2.msra.mxu0 0.0
    %855 = vmatprep.subr.mxu0 0.0
    %856 = vmatpush2.msra.mxu0 0.0
    %857 = vmatprep.subr.mxu0 0.0
    %858 = vmatpush2.msra.mxu0 0.0
    %859 = vmatprep.subr.mxu0 0.0
    %860 = vmatpush2.msra.mxu0 0.0
    %861 = vmatprep.subr.mxu0 0.0
    %862 = vmatpush2.msra.mxu0 0.0
    %863 = vmatprep.subr.mxu0 0.0
    %864 = vmatpush2.msra.mxu0 0.0
    %865 = vmatprep.subr.mxu0 0.0
    %866 = vmatpush2.msra.mxu0 0.0
    %867 = vmatprep.subr.mxu0 0.0
    %868 = vmatpush2.msra.mxu0 0.0
    %869 = vmatprep.subr.mxu0 0.0
    %870 = vmatpush2.msra.mxu0 0.0
    %871 = vmatprep.mubr.f32.mxu0 0.0
    %872 = vmatmul.mubr.f32.gmra.mxu0 %v783
    %v873 = vpop.f32.mrf.mxu0
    %v874 = vadd.f32 %v749, %v873
    %v875 = vpop.f32.mrf.mxu0
    %876 = vmatprep.mubr.f32.mxu0 0.0
    %877 = vmatmul.mubr.f32.gmra.mxu0 %v786
    %v878 = vpop.f32.mrf.mxu0
    %v879 = vadd.f32 %v754, %v878
    %v880 = vpop.f32.mrf.mxu0
    %881 = vmatprep.mubr.f32.mxu0 0.0
    %882 = vmatmul.mubr.f32.gmra.mxu0 %v789
    %v883 = vpop.f32.mrf.mxu0
    %v884 = vadd.f32 %v759, %v883
    %v885 = vpop.f32.mrf.mxu0
    %886 = vmatprep.mubr.f32.mxu0 0.0
    %887 = vmatmul.mubr.f32.gmra.mxu0 %v792
    %v888 = vpop.f32.mrf.mxu0
    %v889 = vadd.f32 %v764, %v888
    %v890 = vpop.f32.mrf.mxu0
    %891 = vmatprep.mubr.f32.mxu0 0.0
    %892 = vmatmul.mubr.f32.gmra.mxu0 %v795
    %v893 = vpop.f32.mrf.mxu0
    %v894 = vadd.f32 %v769, %v893
    %v895 = vpop.f32.mrf.mxu0
    %896 = vmatprep.mubr.f32.mxu0 0.0
    %897 = vmatmul.mubr.f32.gmra.mxu0 %v798
    %v898 = vpop.f32.mrf.mxu0
    %v899 = vadd.f32 %v774, %v898
    %v900 = vpop.f32.mrf.mxu0
    %901 = vmatprep.mubr.f32.mxu0 0.0
    %902 = vmatmul.mubr.f32.gmra.mxu0 %v801
    %v903 = vpop.f32.mrf.mxu0
    %v904 = vadd.f32 %v779, %v903
    %v905 = vpop.f32.mrf.mxu0
    %906 = vdwg.mxu0
    %v907 = vmax.f32 %v874, 0.0
    %v908 = vmax.f32 %v879, 0.0
    %v909 = vmax.f32 %v884, 0.0
    %v910 = vmax.f32 %v889, 0.0
    %v911 = vmax.f32 %v894, 0.0
    %v912 = vmax.f32 %v899, 0.0
    %v913 = vmax.f32 %v904, 0.0
    %v914 = vld [vmem:[%s9] sm:$0x1]
    %v915 = vld [vmem:[#allocation2] sm:$0x1]
    %917 = vset.pattern.permute.xlu0 0
    %918 = vperm.xlu0 %917, %v915
    %v919 = vpop.permute.xlu0 %918
    %v921 = vlaneseq
    %v922 = vshrl.u32 %v921, 7
    %v923 = vsub.s32 0, %v922
    %v924 = vrot.slane %v919, %v923
    %v926 = vsel %vm298, %v914, 0
    %v929 = vsel %vm329, %v913, 0
    %931 = vmatprep.subr.mxu0 0.0
    %932 = vmatpush1.msra.mxu0 0.0
    %933 = vmatprep.subr.mxu0 0.0
    %934 = vmatpush1.msra.mxu0 0.0
    %935 = vmatprep.subr.mxu0 0.0
    %936 = vmatpush1.msra.mxu0 0.0
    %937 = vmatprep.subr.mxu0 0.0
    %938 = vmatpush1.msra.mxu0 0.0
    %939 = vmatprep.subr.mxu0 0.0
    %940 = vmatpush1.msra.mxu0 0.0
    %941 = vmatprep.subr.mxu0 0.0
    %942 = vmatpush1.msra.mxu0 0.0
    %943 = vmatprep.subr.mxu0 0.0
    %944 = vmatpush1.msra.mxu0 0.0
    %945 = vmatprep.subr.mxu0 0.0
    %946 = vmatpush1.msra.mxu0 0.0
    %947 = vmatprep.subr.mxu0 0.0
    %948 = vmatpush1.msra.mxu0 0.0
    %949 = vmatprep.subr.mxu0 0.0
    %950 = vmatpush1.msra.mxu0 %v929
    %951 = vmatprep.subr.mxu0 0.0
    %952 = vmatpush1.msra.mxu0 %v912
    %953 = vmatprep.subr.mxu0 0.0
    %954 = vmatpush1.msra.mxu0 %v911
    %955 = vmatprep.subr.mxu0 0.0
    %956 = vmatpush1.msra.mxu0 %v910
    %957 = vmatprep.subr.mxu0 0.0
    %958 = vmatpush1.msra.mxu0 %v909
    %959 = vmatprep.subr.mxu0 0.0
    %960 = vmatpush1.msra.mxu0 %v908
    %961 = vmatprep.subr.mxu0 0.0
    %962 = vmatpush1.msra.mxu0 %v907
    %963 = vmatprep.subr.mxu0 0.0
    %964 = vmatpush2.msra.mxu0 0.0
    %965 = vmatprep.subr.mxu0 0.0
    %966 = vmatpush2.msra.mxu0 0.0
    %967 = vmatprep.subr.mxu0 0.0
    %968 = vmatpush2.msra.mxu0 0.0
    %969 = vmatprep.subr.mxu0 0.0
    %970 = vmatpush2.msra.mxu0 0.0
    %971 = vmatprep.subr.mxu0 0.0
    %972 = vmatpush2.msra.mxu0 0.0
    %973 = vmatprep.subr.mxu0 0.0
    %974 = vmatpush2.msra.mxu0 0.0
    %975 = vmatprep.subr.mxu0 0.0
    %976 = vmatpush2.msra.mxu0 0.0
    %977 = vmatprep.subr.mxu0 0.0
    %978 = vmatpush2.msra.mxu0 0.0
    %979 = vmatprep.subr.mxu0 0.0
    %980 = vmatpush2.msra.mxu0 0.0
    %981 = vmatprep.subr.mxu0 0.0
    %982 = vmatpush2.msra.mxu0 0.0
    %983 = vmatprep.subr.mxu0 0.0
    %984 = vmatpush2.msra.mxu0 0.0
    %985 = vmatprep.subr.mxu0 0.0
    %986 = vmatpush2.msra.mxu0 0.0
    %987 = vmatprep.subr.mxu0 0.0
    %988 = vmatpush2.msra.mxu0 0.0
    %989 = vmatprep.subr.mxu0 0.0
    %990 = vmatpush2.msra.mxu0 0.0
    %991 = vmatprep.subr.mxu0 0.0
    %992 = vmatpush2.msra.mxu0 0.0
    %993 = vmatprep.subr.mxu0 0.0
    %994 = vmatpush2.msra.mxu0 0.0
    %995 = vmatprep.mubr.f32.mxu0 0.0
    %996 = vmatmul.mubr.f32.gmra.mxu0 %v926
    %v997 = vpop.f32.mrf.mxu0
    %v998 = vadd.f32 %v924, %v997
    %v999 = vpop.f32.mrf.mxu0
    %1000 = vdwg.mxu0
    %v1001 = vsub.f32 0.0, %v998
    %v1002 = vmul.f32 %v1001, 1.442695
    %v1003 = vpow.pop %v1002
    %v1004 = vadd.f32 %v1003, 1.0
    %v1005 = vrcp.pop %v1004
    %1006 = vst [vmem:[#allocation3] sm:$0x1] %v1005
    // Predicated region
    $region46: #{tpu_custom_call.1} parent=1 // pred_check
      _
    $region47: #{tpu_custom_call.1} parent=1 // pred_check_branch
      %1008 = sbr.rel (0) target = $region49
    $region48: #{tpu_custom_call.1} parent=1 // pred_region
      %s1010 = ssub.s32 16, 16
      %1011 = vsyncadd [#allocation4], %s1010
      %s1013 = sshll.u32 [#allocation3], 4
      %s1014 = int_to_ptr.vmem [resolvable:$true] %s1013
      %1016 = dma.vmem_to_hbm [thread:$0]  %s1014, 16, %s11, [#allocation4]
    $region49: #{tpu_custom_call.1} parent=1 // pred_fallthru
      _
    // Predicated region
    $region50: #{tpu_custom_call.1} parent=1 // pred_check
      _
    $region51: #{tpu_custom_call.1} parent=1 // pred_check_branch
      %1018 = sbr.rel (0) target = $region53
    $region52: #{tpu_custom_call.1} parent=1 // pred_region
      %1019 = dma.done [#allocation4], 16
    $region53: #{tpu_custom_call.1} parent=1 // pred_fallthru
      _
    %1020 = vsyncpa [#allocation4], 1

</llo_original>
